<compile_context>
chip_gen: v7x
topology: tpu7x:2x2x1
jax: 0.10.0
libtpu: 0.0.40
codegen_flags: <defaults>
</compile_context>

<pallas_src>
import functools

import jax
import jax.numpy as jnp
from jax import lax
from jax.experimental import pallas as pl
from jax.experimental.pallas import tpu as pltpu


def _factory_kernel(x_ref, w_ref, b_ref, o_ref, *, num_rep, unroll):
    """One row tile of X pushed through num_rep shared (Linear + ReLU) layers.

    x_ref: (tm, Hp)  activation tile
    w_ref: (Hp, Hp)  pre-transposed weight, (in_features, out_features) layout
    b_ref: (1, Hp)   bias
    o_ref: (tm, Hp)  output tile
    """
    tm, hp = x_ref.shape
    w = w_ref[...]                                          # loaded once, resident
    compute_dtype = jnp.result_type(x_ref.dtype, w.dtype)   # bf16 stays bf16 on MXU
    # Hoisted: broadcast_in_dim is not CSE'd across an unrolled loop.
    b_full = jnp.broadcast_to(b_ref[...].astype(jnp.float32), (tm, hp))
    h0 = x_ref[...].astype(jnp.float32)

    def body(_, h):
        # Plain NN matmul on the MXU, f32 accumulation; no per-rep relayout.
        y = jnp.dot(h.astype(compute_dtype), w, preferred_element_type=jnp.float32)
        return jnp.maximum(y + b_full, 0.0)                 # bias + ReLU in f32 (VPU)

    h = lax.fori_loop(0, num_rep, body, h0, unroll=unroll)
    o_ref[...] = h.astype(o_ref.dtype)                      # single down-cast at store


def _round_up(x, m):
    return ((x + m - 1) // m) * m


def _physical_vmem_bytes():
    """Generation-aware VMEM capacity; conservative (v7x-sized) fallback."""
    try:
        info = pltpu.get_tpu_info()
        cap = int(getattr(info, "vmem_capacity_bytes", 0) or 0)
        if cap > 0:
            return cap
    except Exception:
        pass
    return 64 * 1024 * 1024


def _pick_row_tile(m8, hp, act_bytes, w_bytes, budget):
    """Largest row tile whose working set fits `budget`; prefer >= 2 grid steps."""
    fixed = 2 * hp * hp * w_bytes + 2 * hp * 4              # weight (<=2 bufs) + bias

    def fits(t):
        # double-buffered in/out tiles + in-kernel f32 copies (h, y, bias, slack)
        return fixed + (4 * act_bytes + 16) * t * hp <= budget

    for exact in (True, False):                             # prefer no M padding
        for t in (512, 256, 128):
            if 2 * t <= m8 and fits(t) and (not exact or m8 % t == 0):
                return t
    t = m8                                                  # small M: one tile
    while t > 8 and not fits(t):
        t = _round_up(t // 2, 8)
    return t


def factory_forward(x, w, b, *, num_rep):
    """x: (B, H);  w: (H, H) torch-Linear layout (out, in);  b: (H,)."""
    m, k = x.shape
    n = w.shape[0]
    assert w.shape == (n, k) and b.shape == (n,)
    assert n == k, "repeated block must be shape-preserving (Linear(H, H))"

    act_bytes = jnp.dtype(x.dtype).itemsize
    w_bytes = jnp.dtype(w.dtype).itemsize

    hp = _round_up(k, 128)                                  # lane-dense hidden dim
    m8 = _round_up(m, 8)
    cap = _physical_vmem_bytes()
    budget = cap - 12 * 1024 * 1024                         # headroom for Mosaic internals
    tm = _pick_row_tile(m8, hp, act_bytes, w_bytes, budget)
    mp = _round_up(m8, tm)
    grid = (mp // tm,)

    # Zero padding is exact for Linear+ReLU (padded features/rows stay 0) and is
    # sliced off below.  Transpose the weight ONCE wrapper-side so every rep is an
    # NN MXU matmul with no in-loop relayout.
    x_p = x if (mp == m and hp == k) else jnp.pad(x, ((0, mp - m), (0, hp - k)))
    w_p = w if hp == k else jnp.pad(w, ((0, hp - n), (0, hp - k)))
    w_t = jnp.transpose(w_p)                                # (in_features, out_features)
    b_p = b if hp == n else jnp.pad(b, (0, hp - n))
    b2 = b_p.reshape(1, hp)

    cost = pl.CostEstimate(
        flops=int(2 * mp * hp * hp) * num_rep,
        transcendentals=0,
        bytes_accessed=int(2 * mp * hp * act_bytes + hp * hp * w_bytes + hp * act_bytes),
    )

    est = 2 * hp * hp * w_bytes + 2 * hp * 4 + (4 * act_bytes + 16) * tm * hp
    vmem_limit = int(min(budget, max(32 * 1024 * 1024, 2 * est)))
    vmem_limit = max(vmem_limit, min(budget, est + 4 * 1024 * 1024))

    unroll = True if num_rep <= 8 else 4                    # bounded unroll for deep stacks
    kernel = functools.partial(_factory_kernel, num_rep=num_rep, unroll=unroll)

    def _call(single_buffer_consts):
        const_kw = {"pipeline_mode": pl.Buffered(1)} if single_buffer_consts else {}
        in_specs = [
            pl.BlockSpec((tm, hp), lambda i: (i, 0)),              # activation rows
            pl.BlockSpec((hp, hp), lambda i: (0, 0), **const_kw),  # shared weight
            pl.BlockSpec((1, hp), lambda i: (0, 0), **const_kw),   # shared bias
        ]
        return pl.pallas_call(
            kernel,
            out_shape=jax.ShapeDtypeStruct((mp, hp), x.dtype),
            grid=grid,
            in_specs=in_specs,
            out_specs=pl.BlockSpec((tm, hp), lambda i: (i, 0)),
            compiler_params=pltpu.CompilerParams(
                dimension_semantics=("parallel",),
                vmem_limit_bytes=vmem_limit,
            ),
            cost_estimate=cost,
        )(x_p, w_t, b2)

    try:
        out_p = _call(True)      # single-buffer the never-refetched constants
    except Exception:            # pl.Buffered(1) unsupported on this jax -> default bufs
        out_p = _call(False)

    return out_p if (mp == m and hp == n) else out_p[:m, :n]


def factory_ref(x, w, b, num_rep):
    h = x
    for _ in range(num_rep):
        h = jnp.maximum(h @ w.T + b, 0.0)
    return h


if __name__ == "__main__":
    B, H = 8, 32          # small shapes consistent with the module
    NUM_REP = 3           # Factory(num_rep=3, block=Linear(H,H)+ReLU), shared weights

    key = jax.random.PRNGKey(0)
    kx, kw, kb = jax.random.split(key, 3)

    x = jax.random.normal(kx, (B, H), dtype=jnp.float32)
    # Torch-Linear parameter layout: (out_features, in_features).
    w = jax.random.normal(kw, (H, H), dtype=jnp.float32) * 0.1
    b = jax.random.normal(kb, (H,), dtype=jnp.float32) * 0.1

    out = factory_forward(x, w, b, num_rep=NUM_REP)
    out = jax.block_until_ready(out)

    ref = factory_ref(x, w, b, NUM_REP)
    assert out.shape == (B, H), out.shape
    assert jnp.allclose(out, ref, atol=1e-5, rtol=1e-5), "mismatch vs reference"

    print("KERNEL_OK")
</pallas_src>

<mosaic_0001>
module attributes {stable_mosaic.version = 11 : i64} {
  func.func @_factory_kernel(%arg0: i32, %arg1: memref<8x128xf32, #tpu.memory_space<vmem>>, %arg2: memref<128x128xf32, #tpu.memory_space<vmem>>, %arg3: memref<1x128xf32, #tpu.memory_space<vmem>>, %arg4: memref<8x128xf32, #tpu.memory_space<vmem>>) attributes {dimension_semantics = [#tpu.dimension_semantics<parallel>], iteration_bounds = array<i64: 1>, scalar_prefetch = 0 : i64, scratch_operands = 0 : i64, tpu.core_type = #tpu.core_type<tc>, window_params = [{transform_indices = @transform_0, window_bounds = array<i64: 8, 128>}, {pipeline_mode = #tpu.pipeline_mode<synchronous>, transform_indices = @transform_1, window_bounds = array<i64: 128, 128>}, {pipeline_mode = #tpu.pipeline_mode<synchronous>, transform_indices = @transform_2, window_bounds = array<i64: 1, 128>}, {transform_indices = @transform_3, window_bounds = array<i64: 8, 128>}]} {
    %c0 = arith.constant 0 : index
    %c0_0 = arith.constant 0 : index
    %0 = vector.load %arg2[%c0, %c0_0] : memref<128x128xf32, #tpu.memory_space<vmem>>, vector<128x128xf32>
    %c0_1 = arith.constant 0 : index
    %c0_2 = arith.constant 0 : index
    %1 = vector.load %arg3[%c0_1, %c0_2] : memref<1x128xf32, #tpu.memory_space<vmem>>, vector<1x128xf32>
    %2 = vector.shape_cast %1 : vector<1x128xf32> to vector<1x128xf32>
    %3 = vector.broadcast %2 : vector<1x128xf32> to vector<8x128xf32>
    %c0_3 = arith.constant 0 : index
    %c0_4 = arith.constant 0 : index
    %4 = vector.load %arg1[%c0_3, %c0_4] : memref<8x128xf32, #tpu.memory_space<vmem>>, vector<8x128xf32>
    %c0_i32 = arith.constant 0 : i32
    %cst = arith.constant dense<0.000000e+00> : vector<8x128xf32>
    %5 = tpu.matmul %4, %0, %cst {dimension_numbers = #tpu.dot_dimension_numbers<[1], [0], [0], [1], [0, 0, 1, 1], [], []>} : vector<8x128xf32>, vector<128x128xf32>, vector<8x128xf32> -> vector<8x128xf32>
    %6 = arith.addf %5, %3 : vector<8x128xf32>
    %cst_5 = arith.constant 0.000000e+00 : f32
    %7 = vector.broadcast %cst_5 : f32 to vector<8x128xf32>
    %8 = arith.maximumf %6, %7 : vector<8x128xf32>
    %c1_i32 = arith.constant 1 : i32
    %cst_6 = arith.constant dense<0.000000e+00> : vector<8x128xf32>
    %9 = tpu.matmul %8, %0, %cst_6 {dimension_numbers = #tpu.dot_dimension_numbers<[1], [0], [0], [1], [0, 0, 1, 1], [], []>} : vector<8x128xf32>, vector<128x128xf32>, vector<8x128xf32> -> vector<8x128xf32>
    %10 = arith.addf %9, %3 : vector<8x128xf32>
    %cst_7 = arith.constant 0.000000e+00 : f32
    %11 = vector.broadcast %cst_7 : f32 to vector<8x128xf32>
    %12 = arith.maximumf %10, %11 : vector<8x128xf32>
    %c2_i32 = arith.constant 2 : i32
    %cst_8 = arith.constant dense<0.000000e+00> : vector<8x128xf32>
    %13 = tpu.matmul %12, %0, %cst_8 {dimension_numbers = #tpu.dot_dimension_numbers<[1], [0], [0], [1], [0, 0, 1, 1], [], []>} : vector<8x128xf32>, vector<128x128xf32>, vector<8x128xf32> -> vector<8x128xf32>
    %14 = arith.addf %13, %3 : vector<8x128xf32>
    %cst_9 = arith.constant 0.000000e+00 : f32
    %15 = vector.broadcast %cst_9 : f32 to vector<8x128xf32>
    %16 = arith.maximumf %14, %15 : vector<8x128xf32>
    %c0_10 = arith.constant 0 : index
    %c0_11 = arith.constant 0 : index
    %17 = vector.load %arg4[%c0_10, %c0_11] : memref<8x128xf32, #tpu.memory_space<vmem>>, vector<8x128xf32>
    tpu.vector_store %arg4[%c0_10, %c0_11], %16 {strides = array<i32>} : memref<8x128xf32, #tpu.memory_space<vmem>>, vector<8x128xf32>,
    return
  }
  func.func @transform_0(%arg0: i32) -> (i32, i32) {
    %c0_i32 = arith.constant 0 : i32
    %c0_i32_0 = arith.constant 0 : i32
    return %arg0, %c0_i32 : i32, i32
  }
  func.func @transform_1(%arg0: i32) -> (i32, i32) {
    %c0_i32 = arith.constant 0 : i32
    %c0_i32_0 = arith.constant 0 : i32
    %c0_i32_1 = arith.constant 0 : i32
    return %c0_i32, %c0_i32_0 : i32, i32
  }
  func.func @transform_2(%arg0: i32) -> (i32, i32) {
    %c0_i32 = arith.constant 0 : i32
    %c0_i32_0 = arith.constant 0 : i32
    %c0_i32_1 = arith.constant 0 : i32
    return %c0_i32, %c0_i32_0 : i32, i32
  }
  func.func @transform_3(%arg0: i32) -> (i32, i32) {
    %c0_i32 = arith.constant 0 : i32
    %c0_i32_0 = arith.constant 0 : i32
    return %arg0, %c0_i32 : i32, i32
  }
}

module attributes {stable_mosaic.version = 11 : i64} {
  func.func @_factory_kernel(%arg0: i32, %arg1: memref<8x128xf32, #tpu.memory_space<vmem>>, %arg2: memref<128x128xf32, #tpu.memory_space<vmem>>, %arg3: memref<1x128xf32, #tpu.memory_space<vmem>>, %arg4: memref<8x128xf32, #tpu.memory_space<vmem>>) attributes {dimension_semantics = [#tpu.dimension_semantics<parallel>], iteration_bounds = array<i64: 1>, scalar_prefetch = 0 : i64, scratch_operands = 0 : i64, tpu.core_type = #tpu.core_type<tc>, window_params = [{transform_indices = @transform_0, window_bounds = array<i64: 8, 128>}, {pipeline_mode = #tpu.pipeline_mode<synchronous>, transform_indices = @transform_1, window_bounds = array<i64: 128, 128>}, {pipeline_mode = #tpu.pipeline_mode<synchronous>, transform_indices = @transform_2, window_bounds = array<i64: 1, 128>}, {transform_indices = @transform_3, window_bounds = array<i64: 8, 128>}]} {
    %c0 = arith.constant 0 : index
    %c0_0 = arith.constant 0 : index
    %0 = vector.load %arg2[%c0, %c0_0] : memref<128x128xf32, #tpu.memory_space<vmem>>, vector<128x128xf32>
    %c0_1 = arith.constant 0 : index
    %c0_2 = arith.constant 0 : index
    %1 = vector.load %arg3[%c0_1, %c0_2] : memref<1x128xf32, #tpu.memory_space<vmem>>, vector<1x128xf32>
    %2 = vector.shape_cast %1 : vector<1x128xf32> to vector<1x128xf32>
    %3 = vector.broadcast %2 : vector<1x128xf32> to vector<8x128xf32>
    %c0_3 = arith.constant 0 : index
    %c0_4 = arith.constant 0 : index
    %4 = vector.load %arg1[%c0_3, %c0_4] : memref<8x128xf32, #tpu.memory_space<vmem>>, vector<8x128xf32>
    %c0_i32 = arith.constant 0 : i32
    %cst = arith.constant dense<0.000000e+00> : vector<8x128xf32>
    %5 = tpu.matmul %4, %0, %cst {dimension_numbers = #tpu.dot_dimension_numbers<[1], [0], [0], [1], [0, 0, 1, 1], [], []>} : vector<8x128xf32>, vector<128x128xf32>, vector<8x128xf32> -> vector<8x128xf32>
    %6 = arith.addf %5, %3 : vector<8x128xf32>
    %cst_5 = arith.constant 0.000000e+00 : f32
    %7 = vector.broadcast %cst_5 : f32 to vector<8x128xf32>
    %8 = arith.maximumf %6, %7 : vector<8x128xf32>
    %c1_i32 = arith.constant 1 : i32
    %cst_6 = arith.constant dense<0.000000e+00> : vector<8x128xf32>
    %9 = tpu.matmul %8, %0, %cst_6 {dimension_numbers = #tpu.dot_dimension_numbers<[1], [0], [0], [1], [0, 0, 1, 1], [], []>} : vector<8x128xf32>, vector<128x128xf32>, vector<8x128xf32> -> vector<8x128xf32>
    %10 = arith.addf %9, %3 : vector<8x128xf32>
    %cst_7 = arith.constant 0.000000e+00 : f32
    %11 = vector.broadcast %cst_7 : f32 to vector<8x128xf32>
    %12 = arith.maximumf %10, %11 : vector<8x128xf32>
    %c2_i32 = arith.constant 2 : i32
    %cst_8 = arith.constant dense<0.000000e+00> : vector<8x128xf32>
    %13 = tpu.matmul %12, %0, %cst_8 {dimension_numbers = #tpu.dot_dimension_numbers<[1], [0], [0], [1], [0, 0, 1, 1], [], []>} : vector<8x128xf32>, vector<128x128xf32>, vector<8x128xf32> -> vector<8x128xf32>
    %14 = arith.addf %13, %3 : vector<8x128xf32>
    %cst_9 = arith.constant 0.000000e+00 : f32
    %15 = vector.broadcast %cst_9 : f32 to vector<8x128xf32>
    %16 = arith.maximumf %14, %15 : vector<8x128xf32>
    %c0_10 = arith.constant 0 : index
    %c0_11 = arith.constant 0 : index
    %17 = vector.load %arg4[%c0_10, %c0_11] : memref<8x128xf32, #tpu.memory_space<vmem>>, vector<8x128xf32>
    tpu.vector_store %arg4[%c0_10, %c0_11], %16 {strides = array<i32>} : memref<8x128xf32, #tpu.memory_space<vmem>>, vector<8x128xf32>,
    return
  }
  func.func @transform_0(%arg0: i32) -> (i32, i32) {
    %c0_i32 = arith.constant 0 : i32
    %c0_i32_0 = arith.constant 0 : i32
    return %arg0, %c0_i32 : i32, i32
  }
  func.func @transform_1(%arg0: i32) -> (i32, i32) {
    %c0_i32 = arith.constant 0 : i32
    %c0_i32_0 = arith.constant 0 : i32
    %c0_i32_1 = arith.constant 0 : i32
    return %c0_i32, %c0_i32_0 : i32, i32
  }
  func.func @transform_2(%arg0: i32) -> (i32, i32) {
    %c0_i32 = arith.constant 0 : i32
    %c0_i32_0 = arith.constant 0 : i32
    %c0_i32_1 = arith.constant 0 : i32
    return %c0_i32, %c0_i32_0 : i32, i32
  }
  func.func @transform_3(%arg0: i32) -> (i32, i32) {
    %c0_i32 = arith.constant 0 : i32
    %c0_i32_0 = arith.constant 0 : i32
    return %arg0, %c0_i32 : i32, i32
  }
}

</mosaic_0001>

<llo_original>
// kernel: tpu_custom_call.1
$region0: #{tpu_custom_call.1}
  #allocation0 [shape = 'u32[]', space=smem, size = 0x4, offset = 0x4, fixed_abs, tag = 'smem constant byte address 0x4 - core index']
  #allocation1 [shape = 'u32[144,128]{1,0:T(1,128)}', space=vmem, size = 0x12000, scoped, tag = 'internal scratch']
  %s0 = inlined_call_operand.hbm [shape: f32[8,128], index: 0, kind: input, shape index: {}]
  %s1 = inlined_call_operand.hbm [shape: f32[128,128], index: 1, kind: input, shape index: {}]
  %s2 = inlined_call_operand.vmem [shape: f32[1,128], index: 2, kind: input, shape index: {}]
  %s3 = inlined_call_operand.hbm [shape: f32[8,128], index: 3, kind: output, shape index: {}]
  %s4 = sld [smem:[#allocation0]]
  $region30: #{tpu_custom_call.1} parent=0
    _
  %s6 = ssub.s32 1, %s4
  %s7 = scalar_select 0, %s6, %s4
  $region1: #{tpu_custom_call.1} parent=0
    #allocation2 [shape = 'u8[4096]{0}', space=vmem, size = 0x1000, scoped, tag = 'input window, operand 0, single buffered']
    #allocation3 [shape = 's32[1]{0}', space=sflag, size = 0x4, scoped, tag = 'scoped memory for tpu_custom_call.1']
    #allocation4 [shape = 's32[1]{0}', space=sflag, size = 0x4, scoped, tag = 'scoped memory for tpu_custom_call.1']
    #allocation5 [shape = 'u8[65536]{0}', space=vmem, size = 0x10000, scoped, tag = 'input window, operand 1, single buffered']
    #allocation6 [shape = 's32[1]{0}', space=sflag, size = 0x4, scoped, tag = 'scoped memory for tpu_custom_call.1']
    #allocation7 [shape = 'u8[4096]{0}', space=vmem, size = 0x1000, scoped, tag = 'output window, operand 0, single buffered']
    %8 = vsyncpa [#allocation3], 0
    %9 = vsyncpa [#allocation6], 0
    %10 = vsyncpa [#allocation4], 0
    // Predicated region
    $region2: #{tpu_custom_call.1} parent=1 // pred_check
      _
    $region3: #{tpu_custom_call.1} parent=1 // pred_check_branch
      %12 = sbr.rel (0) target = $region5
    $region4: #{tpu_custom_call.1} parent=1 // pred_region
      %s14 = ssub.s32 128, 128
      %15 = vsyncadd [#allocation3], %s14
      %s17 = sshll.u32 [#allocation2], 4
      %s18 = int_to_ptr.vmem [resolvable:$true] %s17
      %20 = dma.hbm_to_vmem [thread:$0]  %s0, 128, %s18, [#allocation3]
    $region5: #{tpu_custom_call.1} parent=1 // pred_fallthru
      _
    // Predicated region
    $region6: #{tpu_custom_call.1} parent=1 // pred_check
      _
    $region7: #{tpu_custom_call.1} parent=1 // pred_check_branch
      %22 = sbr.rel (0) target = $region9
    $region8: #{tpu_custom_call.1} parent=1 // pred_region
      %s24 = ssub.s32 2048, 2048
      %25 = vsyncadd [#allocation6], %s24
      %s26 = sshll.u32 [#allocation5], 4
      %s27 = int_to_ptr.vmem [resolvable:$true] %s26
      %32 = dma.hbm_to_vmem [thread:$0]  %s1, 2048, %s27, [#allocation6], 128, 128, 8
    $region9: #{tpu_custom_call.1} parent=1 // pred_fallthru
      _
    // Predicated region
    $region10: #{tpu_custom_call.1} parent=1 // pred_check
      _
    $region11: #{tpu_custom_call.1} parent=1 // pred_check_branch
      %34 = sbr.rel (0) target = $region13
    $region12: #{tpu_custom_call.1} parent=1 // pred_region
      _
    $region13: #{tpu_custom_call.1} parent=1 // pred_fallthru
      _
    // Predicated region
    $region14: #{tpu_custom_call.1} parent=1 // pred_check
      _
    $region15: #{tpu_custom_call.1} parent=1 // pred_check_branch
      %36 = sbr.rel (0) target = $region17
    $region16: #{tpu_custom_call.1} parent=1 // pred_region
      %37 = dma.done [#allocation3], 128
    $region17: #{tpu_custom_call.1} parent=1 // pred_fallthru
      _
    // Predicated region
    $region18: #{tpu_custom_call.1} parent=1 // pred_check
      _
    $region19: #{tpu_custom_call.1} parent=1 // pred_check_branch
      %39 = sbr.rel (0) target = $region21
    $region20: #{tpu_custom_call.1} parent=1 // pred_region
      %40 = dma.done [#allocation6], 2048
    $region21: #{tpu_custom_call.1} parent=1 // pred_fallthru
      _
    %v41 = vld [vmem:[#allocation5] sm:$0xff]
    %v42 = vld [vmem:[#allocation5 + $0x8] sm:$0xff]
    %v43 = vld [vmem:[#allocation5 + $0x10] sm:$0xff]
    %v44 = vld [vmem:[#allocation5 + $0x18] sm:$0xff]
    %v45 = vld [vmem:[#allocation5 + $0x20] sm:$0xff]
    %v46 = vld [vmem:[#allocation5 + $0x28] sm:$0xff]
    %v47 = vld [vmem:[#allocation5 + $0x30] sm:$0xff]
    %v48 = vld [vmem:[#allocation5 + $0x38] sm:$0xff]
    %v49 = vld [vmem:[#allocation5 + $0x40] sm:$0xff]
    %v50 = vld [vmem:[#allocation5 + $0x48] sm:$0xff]
    %v51 = vld [vmem:[#allocation5 + $0x50] sm:$0xff]
    %v52 = vld [vmem:[#allocation5 + $0x58] sm:$0xff]
    %v53 = vld [vmem:[#allocation5 + $0x60] sm:$0xff]
    %v54 = vld [vmem:[#allocation5 + $0x68] sm:$0xff]
    %v55 = vld [vmem:[#allocation5 + $0x70] sm:$0xff]
    %v56 = vld [vmem:[#allocation5 + $0x78] sm:$0xff]
    %v57 = vld [vmem:[%s2] sm:$0x1]
    %v59 = vlaneseq
    %v60 = vshrl.u32 %v59, 7
    %v61 = vsub.s32 0, %v60
    %v62 = vrot.slane %v57, %v61
    %v64 = vld [vmem:[#allocation2] sm:$0xff]
    %65 = vmatprep.subr.mxu0 0.0
    %66 = vmatpush1.msra.mxu0 %v41
    %67 = vmatprep.subr.mxu0 0.0
    %68 = vmatpush1.msra.mxu0 %v42
    %69 = vmatprep.subr.mxu0 0.0
    %70 = vmatpush1.msra.mxu0 %v43
    %71 = vmatprep.subr.mxu0 0.0
    %72 = vmatpush1.msra.mxu0 %v44
    %73 = vmatprep.subr.mxu0 0.0
    %74 = vmatpush1.msra.mxu0 %v45
    %75 = vmatprep.subr.mxu0 0.0
    %76 = vmatpush1.msra.mxu0 %v46
    %77 = vmatprep.subr.mxu0 0.0
    %78 = vmatpush1.msra.mxu0 %v47
    %79 = vmatprep.subr.mxu0 0.0
    %80 = vmatpush1.msra.mxu0 %v48
    %81 = vmatprep.subr.mxu0 0.0
    %82 = vmatpush1.msra.mxu0 %v49
    %83 = vmatprep.subr.mxu0 0.0
    %84 = vmatpush1.msra.mxu0 %v50
    %85 = vmatprep.subr.mxu0 0.0
    %86 = vmatpush1.msra.mxu0 %v51
    %87 = vmatprep.subr.mxu0 0.0
    %88 = vmatpush1.msra.mxu0 %v52
    %89 = vmatprep.subr.mxu0 0.0
    %90 = vmatpush1.msra.mxu0 %v53
    %91 = vmatprep.subr.mxu0 0.0
    %92 = vmatpush1.msra.mxu0 %v54
    %93 = vmatprep.subr.mxu0 0.0
    %94 = vmatpush1.msra.mxu0 %v55
    %95 = vmatprep.subr.mxu0 0.0
    %96 = vmatpush1.msra.mxu0 %v56
    %97 = vmatprep.subr.mxu0 0.0
    %98 = vmatpush1.msra.mxu0 0.0
    %99 = vmatprep.subr.mxu0 0.0
    %100 = vmatpush1.msra.mxu0 0.0
    %101 = vmatprep.subr.mxu0 0.0
    %102 = vmatpush1.msra.mxu0 0.0
    %103 = vmatprep.subr.mxu0 0.0
    %104 = vmatpush1.msra.mxu0 0.0
    %105 = vmatprep.subr.mxu0 0.0
    %106 = vmatpush1.msra.mxu0 0.0
    %107 = vmatprep.subr.mxu0 0.0
    %108 = vmatpush1.msra.mxu0 0.0
    %109 = vmatprep.subr.mxu0 0.0
    %110 = vmatpush1.msra.mxu0 0.0
    %111 = vmatprep.subr.mxu0 0.0
    %112 = vmatpush1.msra.mxu0 0.0
    %113 = vmatprep.subr.mxu0 0.0
    %114 = vmatpush1.msra.mxu0 0.0
    %115 = vmatprep.subr.mxu0 0.0
    %116 = vmatpush1.msra.mxu0 0.0
    %117 = vmatprep.subr.mxu0 0.0
    %118 = vmatpush1.msra.mxu0 0.0
    %119 = vmatprep.subr.mxu0 0.0
    %120 = vmatpush1.msra.mxu0 0.0
    %121 = vmatprep.subr.mxu0 0.0
    %122 = vmatpush1.msra.mxu0 0.0
    %123 = vmatprep.subr.mxu0 0.0
    %124 = vmatpush1.msra.mxu0 0.0
    %125 = vmatprep.subr.mxu0 0.0
    %126 = vmatpush1.msra.mxu0 0.0
    %127 = vmatprep.subr.mxu0 0.0
    %128 = vmatpush1.msra.mxu0 0.0
    %129 = vmatprep.mubr.f32.mxu0 0.0
    %130 = vmatmul.mubr.f32.gmra.mrb[0].mxu0 %v64
    %v131 = vpop.f32.mrb[0].mxu0
    %v132 = vadd.f32 %v62, %v131
    %v133 = vpop.f32.mrb[0].mxu0
    %134 = vdwg.mxu0
    %v135 = vmax.f32 %v132, 0.0
    %136 = vmatprep.subr.mxu0 0.0
    %137 = vmatpush1.msra.mxu0 %v41
    %138 = vmatprep.subr.mxu0 0.0
    %139 = vmatpush1.msra.mxu0 %v42
    %140 = vmatprep.subr.mxu0 0.0
    %141 = vmatpush1.msra.mxu0 %v43
    %142 = vmatprep.subr.mxu0 0.0
    %143 = vmatpush1.msra.mxu0 %v44
    %144 = vmatprep.subr.mxu0 0.0
    %145 = vmatpush1.msra.mxu0 %v45
    %146 = vmatprep.subr.mxu0 0.0
    %147 = vmatpush1.msra.mxu0 %v46
    %148 = vmatprep.subr.mxu0 0.0
    %149 = vmatpush1.msra.mxu0 %v47
    %150 = vmatprep.subr.mxu0 0.0
    %151 = vmatpush1.msra.mxu0 %v48
    %152 = vmatprep.subr.mxu0 0.0
    %153 = vmatpush1.msra.mxu0 %v49
    %154 = vmatprep.subr.mxu0 0.0
    %155 = vmatpush1.msra.mxu0 %v50
    %156 = vmatprep.subr.mxu0 0.0
    %157 = vmatpush1.msra.mxu0 %v51
    %158 = vmatprep.subr.mxu0 0.0
    %159 = vmatpush1.msra.mxu0 %v52
    %160 = vmatprep.subr.mxu0 0.0
    %161 = vmatpush1.msra.mxu0 %v53
    %162 = vmatprep.subr.mxu0 0.0
    %163 = vmatpush1.msra.mxu0 %v54
    %164 = vmatprep.subr.mxu0 0.0
    %165 = vmatpush1.msra.mxu0 %v55
    %166 = vmatprep.subr.mxu0 0.0
    %167 = vmatpush1.msra.mxu0 %v56
    %168 = vmatprep.subr.mxu0 0.0
    %169 = vmatpush1.msra.mxu0 0.0
    %170 = vmatprep.subr.mxu0 0.0
    %171 = vmatpush1.msra.mxu0 0.0
    %172 = vmatprep.subr.mxu0 0.0
    %173 = vmatpush1.msra.mxu0 0.0
    %174 = vmatprep.subr.mxu0 0.0
    %175 = vmatpush1.msra.mxu0 0.0
    %176 = vmatprep.subr.mxu0 0.0
    %177 = vmatpush1.msra.mxu0 0.0
    %178 = vmatprep.subr.mxu0 0.0
    %179 = vmatpush1.msra.mxu0 0.0
    %180 = vmatprep.subr.mxu0 0.0
    %181 = vmatpush1.msra.mxu0 0.0
    %182 = vmatprep.subr.mxu0 0.0
    %183 = vmatpush1.msra.mxu0 0.0
    %184 = vmatprep.subr.mxu0 0.0
    %185 = vmatpush1.msra.mxu0 0.0
    %186 = vmatprep.subr.mxu0 0.0
    %187 = vmatpush1.msra.mxu0 0.0
    %188 = vmatprep.subr.mxu0 0.0
    %189 = vmatpush1.msra.mxu0 0.0
    %190 = vmatprep.subr.mxu0 0.0
    %191 = vmatpush1.msra.mxu0 0.0
    %192 = vmatprep.subr.mxu0 0.0
    %193 = vmatpush1.msra.mxu0 0.0
    %194 = vmatprep.subr.mxu0 0.0
    %195 = vmatpush1.msra.mxu0 0.0
    %196 = vmatprep.subr.mxu0 0.0
    %197 = vmatpush1.msra.mxu0 0.0
    %198 = vmatprep.subr.mxu0 0.0
    %199 = vmatpush1.msra.mxu0 0.0
    %200 = vmatprep.mubr.f32.mxu0 0.0
    %201 = vmatmul.mubr.f32.gmra.mrb[0].mxu0 %v135
    %v202 = vpop.f32.mrb[0].mxu0
    %v203 = vadd.f32 %v62, %v202
    %v204 = vpop.f32.mrb[0].mxu0
    %205 = vdwg.mxu0
    %v206 = vmax.f32 %v203, 0.0
    %207 = vmatprep.subr.mxu0 0.0
    %208 = vmatpush1.msra.mxu0 %v41
    %209 = vmatprep.subr.mxu0 0.0
    %210 = vmatpush1.msra.mxu0 %v42
    %211 = vmatprep.subr.mxu0 0.0
    %212 = vmatpush1.msra.mxu0 %v43
    %213 = vmatprep.subr.mxu0 0.0
    %214 = vmatpush1.msra.mxu0 %v44
    %215 = vmatprep.subr.mxu0 0.0
    %216 = vmatpush1.msra.mxu0 %v45
    %217 = vmatprep.subr.mxu0 0.0
    %218 = vmatpush1.msra.mxu0 %v46
    %219 = vmatprep.subr.mxu0 0.0
    %220 = vmatpush1.msra.mxu0 %v47
    %221 = vmatprep.subr.mxu0 0.0
    %222 = vmatpush1.msra.mxu0 %v48
    %223 = vmatprep.subr.mxu0 0.0
    %224 = vmatpush1.msra.mxu0 %v49
    %225 = vmatprep.subr.mxu0 0.0
    %226 = vmatpush1.msra.mxu0 %v50
    %227 = vmatprep.subr.mxu0 0.0
    %228 = vmatpush1.msra.mxu0 %v51
    %229 = vmatprep.subr.mxu0 0.0
    %230 = vmatpush1.msra.mxu0 %v52
    %231 = vmatprep.subr.mxu0 0.0
    %232 = vmatpush1.msra.mxu0 %v53
    %233 = vmatprep.subr.mxu0 0.0
    %234 = vmatpush1.msra.mxu0 %v54
    %235 = vmatprep.subr.mxu0 0.0
    %236 = vmatpush1.msra.mxu0 %v55
    %237 = vmatprep.subr.mxu0 0.0
    %238 = vmatpush1.msra.mxu0 %v56
    %239 = vmatprep.subr.mxu0 0.0
    %240 = vmatpush1.msra.mxu0 0.0
    %241 = vmatprep.subr.mxu0 0.0
    %242 = vmatpush1.msra.mxu0 0.0
    %243 = vmatprep.subr.mxu0 0.0
    %244 = vmatpush1.msra.mxu0 0.0
    %245 = vmatprep.subr.mxu0 0.0
    %246 = vmatpush1.msra.mxu0 0.0
    %247 = vmatprep.subr.mxu0 0.0
    %248 = vmatpush1.msra.mxu0 0.0
    %249 = vmatprep.subr.mxu0 0.0
    %250 = vmatpush1.msra.mxu0 0.0
    %251 = vmatprep.subr.mxu0 0.0
    %252 = vmatpush1.msra.mxu0 0.0
    %253 = vmatprep.subr.mxu0 0.0
    %254 = vmatpush1.msra.mxu0 0.0
    %255 = vmatprep.subr.mxu0 0.0
    %256 = vmatpush1.msra.mxu0 0.0
    %257 = vmatprep.subr.mxu0 0.0
    %258 = vmatpush1.msra.mxu0 0.0
    %259 = vmatprep.subr.mxu0 0.0
    %260 = vmatpush1.msra.mxu0 0.0
    %261 = vmatprep.subr.mxu0 0.0
    %262 = vmatpush1.msra.mxu0 0.0
    %263 = vmatprep.subr.mxu0 0.0
    %264 = vmatpush1.msra.mxu0 0.0
    %265 = vmatprep.subr.mxu0 0.0
    %266 = vmatpush1.msra.mxu0 0.0
    %267 = vmatprep.subr.mxu0 0.0
    %268 = vmatpush1.msra.mxu0 0.0
    %269 = vmatprep.subr.mxu0 0.0
    %270 = vmatpush1.msra.mxu0 0.0
    %271 = vmatprep.mubr.f32.mxu0 0.0
    %272 = vmatmul.mubr.f32.gmra.mrb[0].mxu0 %v206
    %v273 = vpop.f32.mrb[0].mxu0
    %v274 = vadd.f32 %v62, %v273
    %v275 = vpop.f32.mrb[0].mxu0
    %276 = vdwg.mxu0
    %v277 = vmax.f32 %v274, 0.0
    %278 = vst [vmem:[#allocation7] sm:$0xff] %v277
    // Predicated region
    $region22: #{tpu_custom_call.1} parent=1 // pred_check
      _
    $region23: #{tpu_custom_call.1} parent=1 // pred_check_branch
      %280 = sbr.rel (0) target = $region25
    $region24: #{tpu_custom_call.1} parent=1 // pred_region
      %s282 = ssub.s32 128, 128
      %283 = vsyncadd [#allocation4], %s282
      %s285 = sshll.u32 [#allocation7], 4
      %s286 = int_to_ptr.vmem [resolvable:$true] %s285
      %288 = dma.vmem_to_hbm [thread:$0]  %s286, 128, %s3, [#allocation4]
    $region25: #{tpu_custom_call.1} parent=1 // pred_fallthru
      _
    // Predicated region
    $region26: #{tpu_custom_call.1} parent=1 // pred_check
      _
    $region27: #{tpu_custom_call.1} parent=1 // pred_check_branch
      %290 = sbr.rel (0) target = $region29
    $region28: #{tpu_custom_call.1} parent=1 // pred_region
      %291 = dma.done [#allocation4], 128
    $region29: #{tpu_custom_call.1} parent=1 // pred_fallthru
      _
    %292 = vsyncpa [#allocation3], 1
    %293 = vsyncpa [#allocation6], 1
    %294 = vsyncpa [#allocation4], 1

// kernel: tpu_custom_call.1
$region0: #{tpu_custom_call.1}
  #allocation0 [shape = 'u32[]', space=smem, size = 0x4, offset = 0x4, fixed_abs, tag = 'smem constant byte address 0x4 - core index']
  #allocation1 [shape = 'u32[144,128]{1,0:T(1,128)}', space=vmem, size = 0x12000, scoped, tag = 'internal scratch']
  %s0 = inlined_call_operand.hbm [shape: f32[8,128], index: 0, kind: input, shape index: {}]
  %s1 = inlined_call_operand.hbm [shape: f32[128,128], index: 1, kind: input, shape index: {}]
  %s2 = inlined_call_operand.vmem [shape: f32[1,128], index: 2, kind: input, shape index: {}]
  %s3 = inlined_call_operand.hbm [shape: f32[8,128], index: 3, kind: output, shape index: {}]
  %s4 = sld [smem:[#allocation0]]
  $region30: #{tpu_custom_call.1} parent=0
    _
  %s6 = ssub.s32 1, %s4
  %s7 = scalar_select 0, %s6, %s4
  $region1: #{tpu_custom_call.1} parent=0
    #allocation2 [shape = 'u8[4096]{0}', space=vmem, size = 0x1000, scoped, tag = 'input window, operand 0, single buffered']
    #allocation3 [shape = 's32[1]{0}', space=sflag, size = 0x4, scoped, tag = 'scoped memory for tpu_custom_call.1']
    #allocation4 [shape = 's32[1]{0}', space=sflag, size = 0x4, scoped, tag = 'scoped memory for tpu_custom_call.1']
    #allocation5 [shape = 'u8[65536]{0}', space=vmem, size = 0x10000, scoped, tag = 'input window, operand 1, single buffered']
    #allocation6 [shape = 's32[1]{0}', space=sflag, size = 0x4, scoped, tag = 'scoped memory for tpu_custom_call.1']
    #allocation7 [shape = 'u8[4096]{0}', space=vmem, size = 0x1000, scoped, tag = 'output window, operand 0, single buffered']
    %8 = vsyncpa [#allocation3], 0
    %9 = vsyncpa [#allocation6], 0
    %10 = vsyncpa [#allocation4], 0
    // Predicated region
    $region2: #{tpu_custom_call.1} parent=1 // pred_check
      _
    $region3: #{tpu_custom_call.1} parent=1 // pred_check_branch
      %12 = sbr.rel (0) target = $region5
    $region4: #{tpu_custom_call.1} parent=1 // pred_region
      %s14 = ssub.s32 128, 128
      %15 = vsyncadd [#allocation3], %s14
      %s17 = sshll.u32 [#allocation2], 4
      %s18 = int_to_ptr.vmem [resolvable:$true] %s17
      %20 = dma.hbm_to_vmem [thread:$0]  %s0, 128, %s18, [#allocation3]
    $region5: #{tpu_custom_call.1} parent=1 // pred_fallthru
      _
    // Predicated region
    $region6: #{tpu_custom_call.1} parent=1 // pred_check
      _
    $region7: #{tpu_custom_call.1} parent=1 // pred_check_branch
      %22 = sbr.rel (0) target = $region9
    $region8: #{tpu_custom_call.1} parent=1 // pred_region
      %s24 = ssub.s32 2048, 2048
      %25 = vsyncadd [#allocation6], %s24
      %s26 = sshll.u32 [#allocation5], 4
      %s27 = int_to_ptr.vmem [resolvable:$true] %s26
      %32 = dma.hbm_to_vmem [thread:$0]  %s1, 2048, %s27, [#allocation6], 128, 128, 8
    $region9: #{tpu_custom_call.1} parent=1 // pred_fallthru
      _
    // Predicated region
    $region10: #{tpu_custom_call.1} parent=1 // pred_check
      _
    $region11: #{tpu_custom_call.1} parent=1 // pred_check_branch
      %34 = sbr.rel (0) target = $region13
    $region12: #{tpu_custom_call.1} parent=1 // pred_region
      _
    $region13: #{tpu_custom_call.1} parent=1 // pred_fallthru
      _
    // Predicated region
    $region14: #{tpu_custom_call.1} parent=1 // pred_check
      _
    $region15: #{tpu_custom_call.1} parent=1 // pred_check_branch
      %36 = sbr.rel (0) target = $region17
    $region16: #{tpu_custom_call.1} parent=1 // pred_region
      %37 = dma.done [#allocation3], 128
    $region17: #{tpu_custom_call.1} parent=1 // pred_fallthru
      _
    // Predicated region
    $region18: #{tpu_custom_call.1} parent=1 // pred_check
      _
    $region19: #{tpu_custom_call.1} parent=1 // pred_check_branch
      %39 = sbr.rel (0) target = $region21
    $region20: #{tpu_custom_call.1} parent=1 // pred_region
      %40 = dma.done [#allocation6], 2048
    $region21: #{tpu_custom_call.1} parent=1 // pred_fallthru
      _
    %v41 = vld [vmem:[#allocation5] sm:$0xff]
    %v42 = vld [vmem:[#allocation5 + $0x8] sm:$0xff]
    %v43 = vld [vmem:[#allocation5 + $0x10] sm:$0xff]
    %v44 = vld [vmem:[#allocation5 + $0x18] sm:$0xff]
    %v45 = vld [vmem:[#allocation5 + $0x20] sm:$0xff]
    %v46 = vld [vmem:[#allocation5 + $0x28] sm:$0xff]
    %v47 = vld [vmem:[#allocation5 + $0x30] sm:$0xff]
    %v48 = vld [vmem:[#allocation5 + $0x38] sm:$0xff]
    %v49 = vld [vmem:[#allocation5 + $0x40] sm:$0xff]
    %v50 = vld [vmem:[#allocation5 + $0x48] sm:$0xff]
    %v51 = vld [vmem:[#allocation5 + $0x50] sm:$0xff]
    %v52 = vld [vmem:[#allocation5 + $0x58] sm:$0xff]
    %v53 = vld [vmem:[#allocation5 + $0x60] sm:$0xff]
    %v54 = vld [vmem:[#allocation5 + $0x68] sm:$0xff]
    %v55 = vld [vmem:[#allocation5 + $0x70] sm:$0xff]
    %v56 = vld [vmem:[#allocation5 + $0x78] sm:$0xff]
    %v57 = vld [vmem:[%s2] sm:$0x1]
    %v59 = vlaneseq
    %v60 = vshrl.u32 %v59, 7
    %v61 = vsub.s32 0, %v60
    %v62 = vrot.slane %v57, %v61
    %v64 = vld [vmem:[#allocation2] sm:$0xff]
    %65 = vmatprep.subr.mxu0 0.0
    %66 = vmatpush1.msra.mxu0 %v41
    %67 = vmatprep.subr.mxu0 0.0
    %68 = vmatpush1.msra.mxu0 %v42
    %69 = vmatprep.subr.mxu0 0.0
    %70 = vmatpush1.msra.mxu0 %v43
    %71 = vmatprep.subr.mxu0 0.0
    %72 = vmatpush1.msra.mxu0 %v44
    %73 = vmatprep.subr.mxu0 0.0
    %74 = vmatpush1.msra.mxu0 %v45
    %75 = vmatprep.subr.mxu0 0.0
    %76 = vmatpush1.msra.mxu0 %v46
    %77 = vmatprep.subr.mxu0 0.0
    %78 = vmatpush1.msra.mxu0 %v47
    %79 = vmatprep.subr.mxu0 0.0
    %80 = vmatpush1.msra.mxu0 %v48
    %81 = vmatprep.subr.mxu0 0.0
    %82 = vmatpush1.msra.mxu0 %v49
    %83 = vmatprep.subr.mxu0 0.0
    %84 = vmatpush1.msra.mxu0 %v50
    %85 = vmatprep.subr.mxu0 0.0
    %86 = vmatpush1.msra.mxu0 %v51
    %87 = vmatprep.subr.mxu0 0.0
    %88 = vmatpush1.msra.mxu0 %v52
    %89 = vmatprep.subr.mxu0 0.0
    %90 = vmatpush1.msra.mxu0 %v53
    %91 = vmatprep.subr.mxu0 0.0
    %92 = vmatpush1.msra.mxu0 %v54
    %93 = vmatprep.subr.mxu0 0.0
    %94 = vmatpush1.msra.mxu0 %v55
    %95 = vmatprep.subr.mxu0 0.0
    %96 = vmatpush1.msra.mxu0 %v56
    %97 = vmatprep.subr.mxu0 0.0
    %98 = vmatpush1.msra.mxu0 0.0
    %99 = vmatprep.subr.mxu0 0.0
    %100 = vmatpush1.msra.mxu0 0.0
    %101 = vmatprep.subr.mxu0 0.0
    %102 = vmatpush1.msra.mxu0 0.0
    %103 = vmatprep.subr.mxu0 0.0
    %104 = vmatpush1.msra.mxu0 0.0
    %105 = vmatprep.subr.mxu0 0.0
    %106 = vmatpush1.msra.mxu0 0.0
    %107 = vmatprep.subr.mxu0 0.0
    %108 = vmatpush1.msra.mxu0 0.0
    %109 = vmatprep.subr.mxu0 0.0
    %110 = vmatpush1.msra.mxu0 0.0
    %111 = vmatprep.subr.mxu0 0.0
    %112 = vmatpush1.msra.mxu0 0.0
    %113 = vmatprep.subr.mxu0 0.0
    %114 = vmatpush1.msra.mxu0 0.0
    %115 = vmatprep.subr.mxu0 0.0
    %116 = vmatpush1.msra.mxu0 0.0
    %117 = vmatprep.subr.mxu0 0.0
    %118 = vmatpush1.msra.mxu0 0.0
    %119 = vmatprep.subr.mxu0 0.0
    %120 = vmatpush1.msra.mxu0 0.0
    %121 = vmatprep.subr.mxu0 0.0
    %122 = vmatpush1.msra.mxu0 0.0
    %123 = vmatprep.subr.mxu0 0.0
    %124 = vmatpush1.msra.mxu0 0.0
    %125 = vmatprep.subr.mxu0 0.0
    %126 = vmatpush1.msra.mxu0 0.0
    %127 = vmatprep.subr.mxu0 0.0
    %128 = vmatpush1.msra.mxu0 0.0
    %129 = vmatprep.mubr.f32.mxu0 0.0
    %130 = vmatmul.mubr.f32.gmra.mrb[0].mxu0 %v64
    %v131 = vpop.f32.mrb[0].mxu0
    %v132 = vadd.f32 %v62, %v131
    %v133 = vpop.f32.mrb[0].mxu0
    %134 = vdwg.mxu0
    %v135 = vmax.f32 %v132, 0.0
    %136 = vmatprep.subr.mxu0 0.0
    %137 = vmatpush1.msra.mxu0 %v41
    %138 = vmatprep.subr.mxu0 0.0
    %139 = vmatpush1.msra.mxu0 %v42
    %140 = vmatprep.subr.mxu0 0.0
    %141 = vmatpush1.msra.mxu0 %v43
    %142 = vmatprep.subr.mxu0 0.0
    %143 = vmatpush1.msra.mxu0 %v44
    %144 = vmatprep.subr.mxu0 0.0
    %145 = vmatpush1.msra.mxu0 %v45
    %146 = vmatprep.subr.mxu0 0.0
    %147 = vmatpush1.msra.mxu0 %v46
    %148 = vmatprep.subr.mxu0 0.0
    %149 = vmatpush1.msra.mxu0 %v47
    %150 = vmatprep.subr.mxu0 0.0
    %151 = vmatpush1.msra.mxu0 %v48
    %152 = vmatprep.subr.mxu0 0.0
    %153 = vmatpush1.msra.mxu0 %v49
    %154 = vmatprep.subr.mxu0 0.0
    %155 = vmatpush1.msra.mxu0 %v50
    %156 = vmatprep.subr.mxu0 0.0
    %157 = vmatpush1.msra.mxu0 %v51
    %158 = vmatprep.subr.mxu0 0.0
    %159 = vmatpush1.msra.mxu0 %v52
    %160 = vmatprep.subr.mxu0 0.0
    %161 = vmatpush1.msra.mxu0 %v53
    %162 = vmatprep.subr.mxu0 0.0
    %163 = vmatpush1.msra.mxu0 %v54
    %164 = vmatprep.subr.mxu0 0.0
    %165 = vmatpush1.msra.mxu0 %v55
    %166 = vmatprep.subr.mxu0 0.0
    %167 = vmatpush1.msra.mxu0 %v56
    %168 = vmatprep.subr.mxu0 0.0
    %169 = vmatpush1.msra.mxu0 0.0
    %170 = vmatprep.subr.mxu0 0.0
    %171 = vmatpush1.msra.mxu0 0.0
    %172 = vmatprep.subr.mxu0 0.0
    %173 = vmatpush1.msra.mxu0 0.0
    %174 = vmatprep.subr.mxu0 0.0
    %175 = vmatpush1.msra.mxu0 0.0
    %176 = vmatprep.subr.mxu0 0.0
    %177 = vmatpush1.msra.mxu0 0.0
    %178 = vmatprep.subr.mxu0 0.0
    %179 = vmatpush1.msra.mxu0 0.0
    %180 = vmatprep.subr.mxu0 0.0
    %181 = vmatpush1.msra.mxu0 0.0
    %182 = vmatprep.subr.mxu0 0.0
    %183 = vmatpush1.msra.mxu0 0.0
    %184 = vmatprep.subr.mxu0 0.0
    %185 = vmatpush1.msra.mxu0 0.0
    %186 = vmatprep.subr.mxu0 0.0
    %187 = vmatpush1.msra.mxu0 0.0
    %188 = vmatprep.subr.mxu0 0.0
    %189 = vmatpush1.msra.mxu0 0.0
    %190 = vmatprep.subr.mxu0 0.0
    %191 = vmatpush1.msra.mxu0 0.0
    %192 = vmatprep.subr.mxu0 0.0
    %193 = vmatpush1.msra.mxu0 0.0
    %194 = vmatprep.subr.mxu0 0.0
    %195 = vmatpush1.msra.mxu0 0.0
    %196 = vmatprep.subr.mxu0 0.0
    %197 = vmatpush1.msra.mxu0 0.0
    %198 = vmatprep.subr.mxu0 0.0
    %199 = vmatpush1.msra.mxu0 0.0
    %200 = vmatprep.mubr.f32.mxu0 0.0
    %201 = vmatmul.mubr.f32.gmra.mrb[0].mxu0 %v135
    %v202 = vpop.f32.mrb[0].mxu0
    %v203 = vadd.f32 %v62, %v202
    %v204 = vpop.f32.mrb[0].mxu0
    %205 = vdwg.mxu0
    %v206 = vmax.f32 %v203, 0.0
    %207 = vmatprep.subr.mxu0 0.0
    %208 = vmatpush1.msra.mxu0 %v41
    %209 = vmatprep.subr.mxu0 0.0
    %210 = vmatpush1.msra.mxu0 %v42
    %211 = vmatprep.subr.mxu0 0.0
    %212 = vmatpush1.msra.mxu0 %v43
    %213 = vmatprep.subr.mxu0 0.0
    %214 = vmatpush1.msra.mxu0 %v44
    %215 = vmatprep.subr.mxu0 0.0
    %216 = vmatpush1.msra.mxu0 %v45
    %217 = vmatprep.subr.mxu0 0.0
    %218 = vmatpush1.msra.mxu0 %v46
    %219 = vmatprep.subr.mxu0 0.0
    %220 = vmatpush1.msra.mxu0 %v47
    %221 = vmatprep.subr.mxu0 0.0
    %222 = vmatpush1.msra.mxu0 %v48
    %223 = vmatprep.subr.mxu0 0.0
    %224 = vmatpush1.msra.mxu0 %v49
    %225 = vmatprep.subr.mxu0 0.0
    %226 = vmatpush1.msra.mxu0 %v50
    %227 = vmatprep.subr.mxu0 0.0
    %228 = vmatpush1.msra.mxu0 %v51
    %229 = vmatprep.subr.mxu0 0.0
    %230 = vmatpush1.msra.mxu0 %v52
    %231 = vmatprep.subr.mxu0 0.0
    %232 = vmatpush1.msra.mxu0 %v53
    %233 = vmatprep.subr.mxu0 0.0
    %234 = vmatpush1.msra.mxu0 %v54
    %235 = vmatprep.subr.mxu0 0.0
    %236 = vmatpush1.msra.mxu0 %v55
    %237 = vmatprep.subr.mxu0 0.0
    %238 = vmatpush1.msra.mxu0 %v56
    %239 = vmatprep.subr.mxu0 0.0
    %240 = vmatpush1.msra.mxu0 0.0
    %241 = vmatprep.subr.mxu0 0.0
    %242 = vmatpush1.msra.mxu0 0.0
    %243 = vmatprep.subr.mxu0 0.0
    %244 = vmatpush1.msra.mxu0 0.0
    %245 = vmatprep.subr.mxu0 0.0
    %246 = vmatpush1.msra.mxu0 0.0
    %247 = vmatprep.subr.mxu0 0.0
    %248 = vmatpush1.msra.mxu0 0.0
    %249 = vmatprep.subr.mxu0 0.0
    %250 = vmatpush1.msra.mxu0 0.0
    %251 = vmatprep.subr.mxu0 0.0
    %252 = vmatpush1.msra.mxu0 0.0
    %253 = vmatprep.subr.mxu0 0.0
    %254 = vmatpush1.msra.mxu0 0.0
    %255 = vmatprep.subr.mxu0 0.0
    %256 = vmatpush1.msra.mxu0 0.0
    %257 = vmatprep.subr.mxu0 0.0
    %258 = vmatpush1.msra.mxu0 0.0
    %259 = vmatprep.subr.mxu0 0.0
    %260 = vmatpush1.msra.mxu0 0.0
    %261 = vmatprep.subr.mxu0 0.0
    %262 = vmatpush1.msra.mxu0 0.0
    %263 = vmatprep.subr.mxu0 0.0
    %264 = vmatpush1.msra.mxu0 0.0
    %265 = vmatprep.subr.mxu0 0.0
    %266 = vmatpush1.msra.mxu0 0.0
    %267 = vmatprep.subr.mxu0 0.0
    %268 = vmatpush1.msra.mxu0 0.0
    %269 = vmatprep.subr.mxu0 0.0
    %270 = vmatpush1.msra.mxu0 0.0
    %271 = vmatprep.mubr.f32.mxu0 0.0
    %272 = vmatmul.mubr.f32.gmra.mrb[0].mxu0 %v206
    %v273 = vpop.f32.mrb[0].mxu0
    %v274 = vadd.f32 %v62, %v273
    %v275 = vpop.f32.mrb[0].mxu0
    %276 = vdwg.mxu0
    %v277 = vmax.f32 %v274, 0.0
    %278 = vst [vmem:[#allocation7] sm:$0xff] %v277
    // Predicated region
    $region22: #{tpu_custom_call.1} parent=1 // pred_check
      _
    $region23: #{tpu_custom_call.1} parent=1 // pred_check_branch
      %280 = sbr.rel (0) target = $region25
    $region24: #{tpu_custom_call.1} parent=1 // pred_region
      %s282 = ssub.s32 128, 128
      %283 = vsyncadd [#allocation4], %s282
      %s285 = sshll.u32 [#allocation7], 4
      %s286 = int_to_ptr.vmem [resolvable:$true] %s285
      %288 = dma.vmem_to_hbm [thread:$0]  %s286, 128, %s3, [#allocation4]
    $region25: #{tpu_custom_call.1} parent=1 // pred_fallthru
      _
    // Predicated region
    $region26: #{tpu_custom_call.1} parent=1 // pred_check
      _
    $region27: #{tpu_custom_call.1} parent=1 // pred_check_branch
      %290 = sbr.rel (0) target = $region29
    $region28: #{tpu_custom_call.1} parent=1 // pred_region
      %291 = dma.done [#allocation4], 128
    $region29: #{tpu_custom_call.1} parent=1 // pred_fallthru
      _
    %292 = vsyncpa [#allocation3], 1
    %293 = vsyncpa [#allocation6], 1
    %294 = vsyncpa [#allocation4], 1

</llo_original>
